<compile_context>
chip_gen: v7x
topology: tpu7x:2x2x1
jax: 0.10.0
libtpu: 0.0.40
codegen_flags: <defaults>
</compile_context>

<pallas_src>
import functools

import jax
import jax.numpy as jnp
from jax.experimental import pallas as pl
from jax.experimental.pallas import tpu as pltpu


def _round_up(n, m):
    return ((n + m - 1) // m) * m


def _pad2(a, rows, cols):
    return jnp.pad(a, ((0, rows - a.shape[0]), (0, cols - a.shape[1])))


def _vae_kernel(x_ref, eps_ref,
                w1_ref, b1_ref, w2_ref, b2_ref,
                wz_ref, bz_ref,
                w4_ref, b4_ref, w5_ref, b5_ref, w6_ref, b6_ref,
                recon_ref, stats_ref, *, zp):
    f32 = jnp.float32
    bf16 = jnp.bfloat16

    # Biases loaded once per tile (no re-broadcast inside any loop).
    b1 = b1_ref[...]
    b2 = b2_ref[...]
    bz = bz_ref[...]
    b4 = b4_ref[...]
    b5 = b5_ref[...]
    b6 = b6_ref[...]

    x = x_ref[...]

    # --- encoder (bf16 operands -> MXU, f32 accumulate, f32 elementwise) ---
    h = jnp.dot(x.astype(bf16), w1_ref[...], preferred_element_type=f32) + b1
    h = jnp.maximum(h, 0.0)
    h = jnp.dot(h.astype(bf16), w2_ref[...], preferred_element_type=f32) + b2
    h = jnp.maximum(h, 0.0)

    # Fused mu || log_var projection: one lane-dense matmul + one wide store.
    stats = jnp.dot(h.astype(bf16), wz_ref[...], preferred_element_type=f32) + bz
    mu = stats[:, :zp]          # lane-aligned 128-multiple slices
    log_var = stats[:, zp:]

    # --- sampling (reparameterization; eps from host PRNG, padded lanes are 0) ---
    std = jnp.exp(0.5 * log_var)
    z = eps_ref[...] * std + mu

    # --- decoder ---
    d = jnp.dot(z.astype(bf16), w4_ref[...], preferred_element_type=f32) + b4
    d = jnp.maximum(d, 0.0)
    d = jnp.dot(d.astype(bf16), w5_ref[...], preferred_element_type=f32) + b5
    d = jnp.maximum(d, 0.0)
    logits = jnp.dot(d.astype(bf16), w6_ref[...], preferred_element_type=f32) + b6

    recon_ref[...] = jax.nn.sigmoid(logits).astype(recon_ref.dtype)
    stats_ref[...] = stats.astype(stats_ref.dtype)


@functools.partial(jax.jit, static_argnames=("tile_b",))
def vae_forward(x, eps, params, tile_b=None):
    """params: dict of (w, b) pairs with w stored as [in, out], b as [1, out].
    Returns (recon[B,x_dim], mu[B,z_dim], log_var[B,z_dim])."""
    B, x_dim = x.shape
    h1 = params["w1"].shape[1]
    h2 = params["w2"].shape[1]
    z_dim = params["w31"].shape[1]

    # Lane-dense padded dims.
    XP = _round_up(x_dim, 128)
    H1 = _round_up(h1, 128)
    H2 = _round_up(h2, 128)
    ZP = _round_up(z_dim, 128)

    if tile_b is None:
        tile_b = min(256, _round_up(B, 8))
    BP = _round_up(B, tile_b)
    grid = (BP // tile_b,)

    bf16, f32 = jnp.bfloat16, jnp.float32

    # Pad + pack weights (bf16) and biases (f32). Zero-padding keeps semantics:
    # padded h lanes are relu(0)=0, padded log_var lanes give std=1 with eps=0,
    # and padded w4 rows are zero, so padding never leaks into real outputs.
    w1p = _pad2(params["w1"], XP, H1).astype(bf16)
    b1p = _pad2(params["b1"], 1, H1).astype(f32)
    w2p = _pad2(params["w2"], H1, H2).astype(bf16)
    b2p = _pad2(params["b2"], 1, H2).astype(f32)
    wz = jnp.concatenate(
        [_pad2(params["w31"], H2, ZP), _pad2(params["w32"], H2, ZP)], axis=1
    ).astype(bf16)                                        # [H2, 2*ZP]
    bz = jnp.concatenate(
        [_pad2(params["b31"], 1, ZP), _pad2(params["b32"], 1, ZP)], axis=1
    ).astype(f32)
    w4p = _pad2(params["w4"], ZP, H2).astype(bf16)
    b4p = _pad2(params["b4"], 1, H2).astype(f32)
    w5p = _pad2(params["w5"], H2, H1).astype(bf16)
    b5p = _pad2(params["b5"], 1, H1).astype(f32)
    w6p = _pad2(params["w6"], H1, XP).astype(bf16)
    b6p = _pad2(params["b6"], 1, XP).astype(f32)

    xp = _pad2(x.astype(f32), BP, XP)
    epsp = _pad2(eps.astype(f32), BP, ZP)

    # Activation tiles walk the batch grid; weights/biases stay on block (0, 0)
    # (resident in VMEM, DMA'd once).
    def act_spec(feat):
        return pl.BlockSpec((tile_b, feat), lambda i: (i, 0))

    def res_spec(shape):
        return pl.BlockSpec(shape, lambda i: (0, 0))

    operands = (xp, epsp,
                w1p, b1p, w2p, b2p, wz, bz,
                w4p, b4p, w5p, b5p, w6p, b6p)
    in_specs = [act_spec(XP), act_spec(ZP)] + [res_spec(op.shape) for op in operands[2:]]

    out_shape = (
        jax.ShapeDtypeStruct((BP, XP), f32),        # reconstruction (padded)
        jax.ShapeDtypeStruct((BP, 2 * ZP), f32),    # packed mu || log_var (padded)
    )
    out_specs = (act_spec(XP), act_spec(2 * ZP))

    # Scoped-VMEM estimate: resident weights/biases + double-buffered IO tiles
    # + intermediate activations, with headroom; capped at 48 MiB for v7x (64 MiB/TC).
    w_bytes = 2 * 2 * (XP * H1 + H1 * H2 + H2 * 2 * ZP + ZP * H2 + H2 * H1 + H1 * XP)
    b_bytes = 2 * 4 * (H1 + H2 + 2 * ZP + H2 + H1 + XP)
    io_bytes = 2 * 4 * tile_b * (XP + ZP + XP + 2 * ZP)
    scratch_bytes = 2 * 4 * tile_b * (H1 + H2 + 2 * ZP + XP)
    est = w_bytes + b_bytes + io_bytes + scratch_bytes
    vmem_limit = min(48 << 20, max(16 << 20, int(est * 1.5)))

    recon_p, stats_p = pl.pallas_call(
        functools.partial(_vae_kernel, zp=ZP),
        out_shape=out_shape,
        grid=grid,
        in_specs=in_specs,
        out_specs=out_specs,
        compiler_params=pltpu.CompilerParams(
            dimension_semantics=("parallel",),
            vmem_limit_bytes=vmem_limit,
        ),
    )(*operands)

    recon = recon_p[:B, :x_dim]
    mu = stats_p[:B, :z_dim]
    log_var = stats_p[:B, ZP:ZP + z_dim]
    return recon, mu, log_var


def init_params(key, x_dim, h_dim1, h_dim2, z_dim):
    """PyTorch nn.Linear-style init (uniform +-1/sqrt(fan_in)).
    Weights stored as [in, out]; biases as [1, out]."""
    dims = [
        ("w1", "b1", x_dim, h_dim1),
        ("w2", "b2", h_dim1, h_dim2),
        ("w31", "b31", h_dim2, z_dim),
        ("w32", "b32", h_dim2, z_dim),
        ("w4", "b4", z_dim, h_dim2),
        ("w5", "b5", h_dim2, h_dim1),
        ("w6", "b6", h_dim1, x_dim),
    ]
    params = {}
    for (wname, bname, fan_in, fan_out) in dims:
        key, kw, kb = jax.random.split(key, 3)
        bound = 1.0 / jnp.sqrt(fan_in)
        params[wname] = jax.random.uniform(
            kw, (fan_in, fan_out), jnp.float32, -bound, bound)
        params[bname] = jax.random.uniform(
            kb, (1, fan_out), jnp.float32, -bound, bound)
    return params


def vae_forward_ref(x, eps, params, dot_dtype=jnp.float32):
    """Pure-JAX reference. dot_dtype=bfloat16 mimics the kernel's MXU operand cast
    (accumulation stays f32)."""
    def dot(a, w):
        return jnp.dot(a.astype(dot_dtype), w.astype(dot_dtype),
                       preferred_element_type=jnp.float32)
    h = jax.nn.relu(dot(x, params["w1"]) + params["b1"])
    h = jax.nn.relu(dot(h, params["w2"]) + params["b2"])
    mu = dot(h, params["w31"]) + params["b31"]
    log_var = dot(h, params["w32"]) + params["b32"]
    z = eps * jnp.exp(0.5 * log_var) + mu
    d = jax.nn.relu(dot(z, params["w4"]) + params["b4"])
    d = jax.nn.relu(dot(d, params["w5"]) + params["b5"])
    recon = jax.nn.sigmoid(dot(d, params["w6"]) + params["b6"])
    return recon, mu, log_var


def _check(B, x_dim, h1, h2, z_dim, key, tile_b=None):
    key, kx, keps, kparams = jax.random.split(key, 4)
    x = jax.random.uniform(kx, (B, x_dim), jnp.float32)
    eps = jax.random.normal(keps, (B, z_dim), jnp.float32)
    params = init_params(kparams, x_dim, h1, h2, z_dim)

    recon, mu, log_var = jax.block_until_ready(vae_forward(x, eps, params, tile_b=tile_b))

    r_ref, mu_ref, lv_ref = vae_forward_ref(x, eps, params, dot_dtype=jnp.bfloat16)
    assert recon.shape == (B, x_dim) and mu.shape == (B, z_dim) and log_var.shape == (B, z_dim)
    # bf16 matmul operands -> loosened tolerances vs the bf16-matched reference.
    assert jnp.allclose(recon, r_ref, atol=2e-2, rtol=2e-2), "recon mismatch"
    assert jnp.allclose(mu, mu_ref, atol=2e-2, rtol=2e-2), "mu mismatch"
    assert jnp.allclose(log_var, lv_ref, atol=2e-2, rtol=2e-2), "log_var mismatch"
    return key


if __name__ == "__main__":
    key = jax.random.PRNGKey(0)

    # Small demo config (latency-bound: single grid step, no extra pipelining).
    key = _check(B=8, x_dim=256, h1=128, h2=128, z_dim=32, key=key)

    # Training-scale batch: exercises the batch grid (2 steps of TILE_B=256),
    # resident weights, and the "parallel" axis for multi-TC chips.
    key = _check(B=512, x_dim=256, h1=128, h2=128, z_dim=32, key=key, tile_b=256)

    print("KERNEL_OK")
</pallas_src>

<mosaic_0001>
module attributes {stable_mosaic.version = 11 : i64} {
  func.func @_vae_kernel(%arg0: i32, %arg1: memref<8x256xf32, #tpu.memory_space<vmem>>, %arg2: memref<8x128xf32, #tpu.memory_space<vmem>>, %arg3: memref<256x128xbf16, #tpu.memory_space<vmem>>, %arg4: memref<1x128xf32, #tpu.memory_space<vmem>>, %arg5: memref<128x128xbf16, #tpu.memory_space<vmem>>, %arg6: memref<1x128xf32, #tpu.memory_space<vmem>>, %arg7: memref<128x256xbf16, #tpu.memory_space<vmem>>, %arg8: memref<1x256xf32, #tpu.memory_space<vmem>>, %arg9: memref<128x128xbf16, #tpu.memory_space<vmem>>, %arg10: memref<1x128xf32, #tpu.memory_space<vmem>>, %arg11: memref<128x128xbf16, #tpu.memory_space<vmem>>, %arg12: memref<1x128xf32, #tpu.memory_space<vmem>>, %arg13: memref<128x256xbf16, #tpu.memory_space<vmem>>, %arg14: memref<1x256xf32, #tpu.memory_space<vmem>>, %arg15: memref<8x256xf32, #tpu.memory_space<vmem>>, %arg16: memref<8x256xf32, #tpu.memory_space<vmem>>) attributes {dimension_semantics = [#tpu.dimension_semantics<parallel>], iteration_bounds = array<i64: 1>, scalar_prefetch = 0 : i64, scratch_operands = 0 : i64, tpu.core_type = #tpu.core_type<tc>, window_params = [{transform_indices = @transform_0, window_bounds = array<i64: 8, 256>}, {transform_indices = @transform_1, window_bounds = array<i64: 8, 128>}, {pipeline_mode = #tpu.pipeline_mode<synchronous>, transform_indices = @transform_2, window_bounds = array<i64: 256, 128>}, {pipeline_mode = #tpu.pipeline_mode<synchronous>, transform_indices = @transform_3, window_bounds = array<i64: 1, 128>}, {pipeline_mode = #tpu.pipeline_mode<synchronous>, transform_indices = @transform_4, window_bounds = array<i64: 128, 128>}, {pipeline_mode = #tpu.pipeline_mode<synchronous>, transform_indices = @transform_5, window_bounds = array<i64: 1, 128>}, {pipeline_mode = #tpu.pipeline_mode<synchronous>, transform_indices = @transform_6, window_bounds = array<i64: 128, 256>}, {pipeline_mode = #tpu.pipeline_mode<synchronous>, transform_indices = @transform_7, window_bounds = array<i64: 1, 256>}, {pipeline_mode = #tpu.pipeline_mode<synchronous>, transform_indices = @transform_8, window_bounds = array<i64: 128, 128>}, {pipeline_mode = #tpu.pipeline_mode<synchronous>, transform_indices = @transform_9, window_bounds = array<i64: 1, 128>}, {pipeline_mode = #tpu.pipeline_mode<synchronous>, transform_indices = @transform_10, window_bounds = array<i64: 128, 128>}, {pipeline_mode = #tpu.pipeline_mode<synchronous>, transform_indices = @transform_11, window_bounds = array<i64: 1, 128>}, {pipeline_mode = #tpu.pipeline_mode<synchronous>, transform_indices = @transform_12, window_bounds = array<i64: 128, 256>}, {pipeline_mode = #tpu.pipeline_mode<synchronous>, transform_indices = @transform_13, window_bounds = array<i64: 1, 256>}, {transform_indices = @transform_14, window_bounds = array<i64: 8, 256>}, {transform_indices = @transform_15, window_bounds = array<i64: 8, 256>}]} {
    %c0 = arith.constant 0 : index
    %c0_0 = arith.constant 0 : index
    %0 = vector.load %arg4[%c0, %c0_0] : memref<1x128xf32, #tpu.memory_space<vmem>>, vector<1x128xf32>
    %c0_1 = arith.constant 0 : index
    %c0_2 = arith.constant 0 : index
    %1 = vector.load %arg6[%c0_1, %c0_2] : memref<1x128xf32, #tpu.memory_space<vmem>>, vector<1x128xf32>
    %c0_3 = arith.constant 0 : index
    %c0_4 = arith.constant 0 : index
    %2 = vector.load %arg8[%c0_3, %c0_4] : memref<1x256xf32, #tpu.memory_space<vmem>>, vector<1x256xf32>
    %c0_5 = arith.constant 0 : index
    %c0_6 = arith.constant 0 : index
    %3 = vector.load %arg10[%c0_5, %c0_6] : memref<1x128xf32, #tpu.memory_space<vmem>>, vector<1x128xf32>
    %c0_7 = arith.constant 0 : index
    %c0_8 = arith.constant 0 : index
    %4 = vector.load %arg12[%c0_7, %c0_8] : memref<1x128xf32, #tpu.memory_space<vmem>>, vector<1x128xf32>
    %c0_9 = arith.constant 0 : index
    %c0_10 = arith.constant 0 : index
    %5 = vector.load %arg14[%c0_9, %c0_10] : memref<1x256xf32, #tpu.memory_space<vmem>>, vector<1x256xf32>
    %c0_11 = arith.constant 0 : index
    %c0_12 = arith.constant 0 : index
    %6 = vector.load %arg1[%c0_11, %c0_12] : memref<8x256xf32, #tpu.memory_space<vmem>>, vector<8x256xf32>
    %7 = arith.truncf %6 : vector<8x256xf32> to vector<8x256xbf16>
    %c0_13 = arith.constant 0 : index
    %c0_14 = arith.constant 0 : index
    %8 = vector.load %arg3[%c0_13, %c0_14] : memref<256x128xbf16, #tpu.memory_space<vmem>>, vector<256x128xbf16>
    %cst = arith.constant dense<0.000000e+00> : vector<8x128xf32>
    %9 = tpu.matmul %7, %8, %cst {dimension_numbers = #tpu.dot_dimension_numbers<[1], [0], [0], [1], [0, 0, 1, 1], [], []>} : vector<8x256xbf16>, vector<256x128xbf16>, vector<8x128xf32> -> vector<8x128xf32>
    %10 = vector.broadcast %0 : vector<1x128xf32> to vector<8x128xf32>
    %11 = arith.addf %9, %10 : vector<8x128xf32>
    %cst_15 = arith.constant 0.000000e+00 : f32
    %12 = vector.broadcast %cst_15 : f32 to vector<8x128xf32>
    %13 = arith.maximumf %11, %12 : vector<8x128xf32>
    %14 = arith.truncf %13 : vector<8x128xf32> to vector<8x128xbf16>
    %c0_16 = arith.constant 0 : index
    %c0_17 = arith.constant 0 : index
    %15 = vector.load %arg5[%c0_16, %c0_17] : memref<128x128xbf16, #tpu.memory_space<vmem>>, vector<128x128xbf16>
    %cst_18 = arith.constant dense<0.000000e+00> : vector<8x128xf32>
    %16 = tpu.matmul %14, %15, %cst_18 {dimension_numbers = #tpu.dot_dimension_numbers<[1], [0], [0], [1], [0, 0, 1, 1], [], []>} : vector<8x128xbf16>, vector<128x128xbf16>, vector<8x128xf32> -> vector<8x128xf32>
    %17 = vector.broadcast %1 : vector<1x128xf32> to vector<8x128xf32>
    %18 = arith.addf %16, %17 : vector<8x128xf32>
    %cst_19 = arith.constant 0.000000e+00 : f32
    %19 = vector.broadcast %cst_19 : f32 to vector<8x128xf32>
    %20 = arith.maximumf %18, %19 : vector<8x128xf32>
    %21 = arith.truncf %20 : vector<8x128xf32> to vector<8x128xbf16>
    %c0_20 = arith.constant 0 : index
    %c0_21 = arith.constant 0 : index
    %22 = vector.load %arg7[%c0_20, %c0_21] : memref<128x256xbf16, #tpu.memory_space<vmem>>, vector<128x256xbf16>
    %cst_22 = arith.constant dense<0.000000e+00> : vector<8x256xf32>
    %23 = tpu.matmul %21, %22, %cst_22 {dimension_numbers = #tpu.dot_dimension_numbers<[1], [0], [0], [1], [0, 0, 1, 1], [], []>} : vector<8x128xbf16>, vector<128x256xbf16>, vector<8x256xf32> -> vector<8x256xf32>
    %24 = vector.broadcast %2 : vector<1x256xf32> to vector<8x256xf32>
    %25 = arith.addf %23, %24 : vector<8x256xf32>
    %26 = vector.extract_strided_slice %25 {offsets = [0, 0], sizes = [8, 128], strides = [1, 1]} : vector<8x256xf32> to vector<8x128xf32>
    %27 = vector.extract_strided_slice %25 {offsets = [0, 128], sizes = [8, 128], strides = [1, 1]} : vector<8x256xf32> to vector<8x128xf32>
    %cst_23 = arith.constant 5.000000e-01 : f32
    %28 = vector.broadcast %cst_23 : f32 to vector<8x128xf32>
    %29 = arith.mulf %28, %27 : vector<8x128xf32>
    %30 = math.exp %29 : vector<8x128xf32>
    %c0_24 = arith.constant 0 : index
    %c0_25 = arith.constant 0 : index
    %31 = vector.load %arg2[%c0_24, %c0_25] : memref<8x128xf32, #tpu.memory_space<vmem>>, vector<8x128xf32>
    %32 = arith.mulf %31, %30 : vector<8x128xf32>
    %33 = arith.addf %32, %26 : vector<8x128xf32>
    %34 = arith.truncf %33 : vector<8x128xf32> to vector<8x128xbf16>
    %c0_26 = arith.constant 0 : index
    %c0_27 = arith.constant 0 : index
    %35 = vector.load %arg9[%c0_26, %c0_27] : memref<128x128xbf16, #tpu.memory_space<vmem>>, vector<128x128xbf16>
    %cst_28 = arith.constant dense<0.000000e+00> : vector<8x128xf32>
    %36 = tpu.matmul %34, %35, %cst_28 {dimension_numbers = #tpu.dot_dimension_numbers<[1], [0], [0], [1], [0, 0, 1, 1], [], []>} : vector<8x128xbf16>, vector<128x128xbf16>, vector<8x128xf32> -> vector<8x128xf32>
    %37 = vector.broadcast %3 : vector<1x128xf32> to vector<8x128xf32>
    %38 = arith.addf %36, %37 : vector<8x128xf32>
    %cst_29 = arith.constant 0.000000e+00 : f32
    %39 = vector.broadcast %cst_29 : f32 to vector<8x128xf32>
    %40 = arith.maximumf %38, %39 : vector<8x128xf32>
    %41 = arith.truncf %40 : vector<8x128xf32> to vector<8x128xbf16>
    %c0_30 = arith.constant 0 : index
    %c0_31 = arith.constant 0 : index
    %42 = vector.load %arg11[%c0_30, %c0_31] : memref<128x128xbf16, #tpu.memory_space<vmem>>, vector<128x128xbf16>
    %cst_32 = arith.constant dense<0.000000e+00> : vector<8x128xf32>
    %43 = tpu.matmul %41, %42, %cst_32 {dimension_numbers = #tpu.dot_dimension_numbers<[1], [0], [0], [1], [0, 0, 1, 1], [], []>} : vector<8x128xbf16>, vector<128x128xbf16>, vector<8x128xf32> -> vector<8x128xf32>
    %44 = vector.broadcast %4 : vector<1x128xf32> to vector<8x128xf32>
    %45 = arith.addf %43, %44 : vector<8x128xf32>
    %cst_33 = arith.constant 0.000000e+00 : f32
    %46 = vector.broadcast %cst_33 : f32 to vector<8x128xf32>
    %47 = arith.maximumf %45, %46 : vector<8x128xf32>
    %48 = arith.truncf %47 : vector<8x128xf32> to vector<8x128xbf16>
    %c0_34 = arith.constant 0 : index
    %c0_35 = arith.constant 0 : index
    %49 = vector.load %arg13[%c0_34, %c0_35] : memref<128x256xbf16, #tpu.memory_space<vmem>>, vector<128x256xbf16>
    %cst_36 = arith.constant dense<0.000000e+00> : vector<8x256xf32>
    %50 = tpu.matmul %48, %49, %cst_36 {dimension_numbers = #tpu.dot_dimension_numbers<[1], [0], [0], [1], [0, 0, 1, 1], [], []>} : vector<8x128xbf16>, vector<128x256xbf16>, vector<8x256xf32> -> vector<8x256xf32>
    %51 = vector.broadcast %5 : vector<1x256xf32> to vector<8x256xf32>
    %52 = arith.addf %50, %51 : vector<8x256xf32>
    %53 = arith.negf %52 : vector<8x256xf32>
    %54 = math.exp %53 : vector<8x256xf32>
    %cst_37 = arith.constant 1.000000e+00 : f32
    %55 = vector.broadcast %cst_37 : f32 to vector<8x256xf32>
    %56 = arith.addf %55, %54 : vector<8x256xf32>
    %57 = arith.divf %55, %56 : vector<8x256xf32>
    %c0_38 = arith.constant 0 : index
    %c0_39 = arith.constant 0 : index
    %58 = vector.load %arg15[%c0_38, %c0_39] : memref<8x256xf32, #tpu.memory_space<vmem>>, vector<8x256xf32>
    tpu.vector_store %arg15[%c0_38, %c0_39], %57 {strides = array<i32>} : memref<8x256xf32, #tpu.memory_space<vmem>>, vector<8x256xf32>,
    %c0_40 = arith.constant 0 : index
    %c0_41 = arith.constant 0 : index
    %59 = vector.load %arg16[%c0_40, %c0_41] : memref<8x256xf32, #tpu.memory_space<vmem>>, vector<8x256xf32>
    tpu.vector_store %arg16[%c0_40, %c0_41], %25 {strides = array<i32>} : memref<8x256xf32, #tpu.memory_space<vmem>>, vector<8x256xf32>,
    return
  }
  func.func @transform_0(%arg0: i32) -> (i32, i32) {
    %c0_i32 = arith.constant 0 : i32
    %c0_i32_0 = arith.constant 0 : i32
    return %arg0, %c0_i32 : i32, i32
  }
  func.func @transform_1(%arg0: i32) -> (i32, i32) {
    %c0_i32 = arith.constant 0 : i32
    %c0_i32_0 = arith.constant 0 : i32
    return %arg0, %c0_i32 : i32, i32
  }
  func.func @transform_2(%arg0: i32) -> (i32, i32) {
    %c0_i32 = arith.constant 0 : i32
    %c0_i32_0 = arith.constant 0 : i32
    %c0_i32_1 = arith.constant 0 : i32
    return %c0_i32, %c0_i32_0 : i32, i32
  }
  func.func @transform_3(%arg0: i32) -> (i32, i32) {
    %c0_i32 = arith.constant 0 : i32
    %c0_i32_0 = arith.constant 0 : i32
    %c0_i32_1 = arith.constant 0 : i32
    return %c0_i32, %c0_i32_0 : i32, i32
  }
  func.func @transform_4(%arg0: i32) -> (i32, i32) {
    %c0_i32 = arith.constant 0 : i32
    %c0_i32_0 = arith.constant 0 : i32
    %c0_i32_1 = arith.constant 0 : i32
    return %c0_i32, %c0_i32_0 : i32, i32
  }
  func.func @transform_5(%arg0: i32) -> (i32, i32) {
    %c0_i32 = arith.constant 0 : i32
    %c0_i32_0 = arith.constant 0 : i32
    %c0_i32_1 = arith.constant 0 : i32
    return %c0_i32, %c0_i32_0 : i32, i32
  }
  func.func @transform_6(%arg0: i32) -> (i32, i32) {
    %c0_i32 = arith.constant 0 : i32
    %c0_i32_0 = arith.constant 0 : i32
    %c0_i32_1 = arith.constant 0 : i32
    return %c0_i32, %c0_i32_0 : i32, i32
  }
  func.func @transform_7(%arg0: i32) -> (i32, i32) {
    %c0_i32 = arith.constant 0 : i32
    %c0_i32_0 = arith.constant 0 : i32
    %c0_i32_1 = arith.constant 0 : i32
    return %c0_i32, %c0_i32_0 : i32, i32
  }
  func.func @transform_8(%arg0: i32) -> (i32, i32) {
    %c0_i32 = arith.constant 0 : i32
    %c0_i32_0 = arith.constant 0 : i32
    %c0_i32_1 = arith.constant 0 : i32
    return %c0_i32, %c0_i32_0 : i32, i32
  }
  func.func @transform_9(%arg0: i32) -> (i32, i32) {
    %c0_i32 = arith.constant 0 : i32
    %c0_i32_0 = arith.constant 0 : i32
    %c0_i32_1 = arith.constant 0 : i32
    return %c0_i32, %c0_i32_0 : i32, i32
  }
  func.func @transform_10(%arg0: i32) -> (i32, i32) {
    %c0_i32 = arith.constant 0 : i32
    %c0_i32_0 = arith.constant 0 : i32
    %c0_i32_1 = arith.constant 0 : i32
    return %c0_i32, %c0_i32_0 : i32, i32
  }
  func.func @transform_11(%arg0: i32) -> (i32, i32) {
    %c0_i32 = arith.constant 0 : i32
    %c0_i32_0 = arith.constant 0 : i32
    %c0_i32_1 = arith.constant 0 : i32
    return %c0_i32, %c0_i32_0 : i32, i32
  }
  func.func @transform_12(%arg0: i32) -> (i32, i32) {
    %c0_i32 = arith.constant 0 : i32
    %c0_i32_0 = arith.constant 0 : i32
    %c0_i32_1 = arith.constant 0 : i32
    return %c0_i32, %c0_i32_0 : i32, i32
  }
  func.func @transform_13(%arg0: i32) -> (i32, i32) {
    %c0_i32 = arith.constant 0 : i32
    %c0_i32_0 = arith.constant 0 : i32
    %c0_i32_1 = arith.constant 0 : i32
    return %c0_i32, %c0_i32_0 : i32, i32
  }
  func.func @transform_14(%arg0: i32) -> (i32, i32) {
    %c0_i32 = arith.constant 0 : i32
    %c0_i32_0 = arith.constant 0 : i32
    return %arg0, %c0_i32 : i32, i32
  }
  func.func @transform_15(%arg0: i32) -> (i32, i32) {
    %c0_i32 = arith.constant 0 : i32
    %c0_i32_0 = arith.constant 0 : i32
    return %arg0, %c0_i32 : i32, i32
  }
}

</mosaic_0001>

<llo_original>
// kernel: vae_forward.1
$region0: #{vae_forward.1}
  #allocation0 [shape = 'u32[]', space=smem, size = 0x4, offset = 0x4, fixed_abs, tag = 'smem constant byte address 0x4 - core index']
  #allocation1 [shape = 'u32[144,128]{1,0:T(1,128)}', space=vmem, size = 0x12000, scoped, tag = 'internal scratch']
  %s0 = inlined_call_operand.vmem [shape: f32[8,256], index: 0, kind: input, shape index: {}]
  %s1 = inlined_call_operand.vmem [shape: f32[8,128], index: 1, kind: input, shape index: {}]
  %s2 = inlined_call_operand.vmem [shape: bf16[256,128], index: 2, kind: input, shape index: {}]
  %s3 = inlined_call_operand.vmem [shape: f32[1,128], index: 3, kind: input, shape index: {}]
  %s4 = inlined_call_operand.vmem [shape: bf16[128,128], index: 4, kind: input, shape index: {}]
  %s5 = inlined_call_operand.vmem [shape: f32[1,128], index: 5, kind: input, shape index: {}]
  %s6 = inlined_call_operand.vmem [shape: bf16[128,256], index: 6, kind: input, shape index: {}]
  %s7 = inlined_call_operand.vmem [shape: f32[1,256], index: 7, kind: input, shape index: {}]
  %s8 = inlined_call_operand.vmem [shape: bf16[128,128], index: 8, kind: input, shape index: {}]
  %s9 = inlined_call_operand.vmem [shape: f32[1,128], index: 9, kind: input, shape index: {}]
  %s10 = inlined_call_operand.vmem [shape: bf16[128,128], index: 10, kind: input, shape index: {}]
  %s11 = inlined_call_operand.vmem [shape: f32[1,128], index: 11, kind: input, shape index: {}]
  %s12 = inlined_call_operand.vmem [shape: bf16[128,256], index: 12, kind: input, shape index: {}]
  %s13 = inlined_call_operand.vmem [shape: f32[1,256], index: 13, kind: input, shape index: {}]
  %s14 = inlined_call_operand.hbm [shape: f32[8,256], index: 14, kind: output, shape index: {0}]
  %s15 = inlined_call_operand.vmem [shape: f32[8,256], index: 15, kind: output, shape index: {1}]
  %16 = xla_tuple %s14, %s15
  %s17 = sld [smem:[#allocation0]]
  $region74: #{vae_forward.1} parent=0
    _
  %s19 = ssub.s32 1, %s17
  %s20 = scalar_select 0, %s19, %s17
  $region1: #{vae_forward.1} parent=0
    #allocation2 [shape = 'u8[8192]{0}', space=vmem, size = 0x2000, scoped, tag = 'output window, operand 0, single buffered']
    #allocation3 [shape = 's32[1]{0}', space=sflag, size = 0x4, scoped, tag = 'scoped memory for vae_forward.1']
    %21 = vsyncpa [#allocation3], 0
    // Predicated region
    $region2: #{vae_forward.1} parent=1 // pred_check
      _
    $region3: #{vae_forward.1} parent=1 // pred_check_branch
      %23 = sbr.rel (0) target = $region5
    $region4: #{vae_forward.1} parent=1 // pred_region
      _
    $region5: #{vae_forward.1} parent=1 // pred_fallthru
      _
    // Predicated region
    $region6: #{vae_forward.1} parent=1 // pred_check
      _
    $region7: #{vae_forward.1} parent=1 // pred_check_branch
      %25 = sbr.rel (0) target = $region9
    $region8: #{vae_forward.1} parent=1 // pred_region
      _
    $region9: #{vae_forward.1} parent=1 // pred_fallthru
      _
    // Predicated region
    $region10: #{vae_forward.1} parent=1 // pred_check
      _
    $region11: #{vae_forward.1} parent=1 // pred_check_branch
      %27 = sbr.rel (0) target = $region13
    $region12: #{vae_forward.1} parent=1 // pred_region
      _
    $region13: #{vae_forward.1} parent=1 // pred_fallthru
      _
    // Predicated region
    $region14: #{vae_forward.1} parent=1 // pred_check
      _
    $region15: #{vae_forward.1} parent=1 // pred_check_branch
      %29 = sbr.rel (0) target = $region17
    $region16: #{vae_forward.1} parent=1 // pred_region
      _
    $region17: #{vae_forward.1} parent=1 // pred_fallthru
      _
    // Predicated region
    $region18: #{vae_forward.1} parent=1 // pred_check
      _
    $region19: #{vae_forward.1} parent=1 // pred_check_branch
      %31 = sbr.rel (0) target = $region21
    $region20: #{vae_forward.1} parent=1 // pred_region
      _
    $region21: #{vae_forward.1} parent=1 // pred_fallthru
      _
    // Predicated region
    $region22: #{vae_forward.1} parent=1 // pred_check
      _
    $region23: #{vae_forward.1} parent=1 // pred_check_branch
      %33 = sbr.rel (0) target = $region25
    $region24: #{vae_forward.1} parent=1 // pred_region
      _
    $region25: #{vae_forward.1} parent=1 // pred_fallthru
      _
    // Predicated region
    $region26: #{vae_forward.1} parent=1 // pred_check
      _
    $region27: #{vae_forward.1} parent=1 // pred_check_branch
      %35 = sbr.rel (0) target = $region29
    $region28: #{vae_forward.1} parent=1 // pred_region
      _
    $region29: #{vae_forward.1} parent=1 // pred_fallthru
      _
    // Predicated region
    $region30: #{vae_forward.1} parent=1 // pred_check
      _
    $region31: #{vae_forward.1} parent=1 // pred_check_branch
      %37 = sbr.rel (0) target = $region33
    $region32: #{vae_forward.1} parent=1 // pred_region
      _
    $region33: #{vae_forward.1} parent=1 // pred_fallthru
      _
    // Predicated region
    $region34: #{vae_forward.1} parent=1 // pred_check
      _
    $region35: #{vae_forward.1} parent=1 // pred_check_branch
      %39 = sbr.rel (0) target = $region37
    $region36: #{vae_forward.1} parent=1 // pred_region
      _
    $region37: #{vae_forward.1} parent=1 // pred_fallthru
      _
    // Predicated region
    $region38: #{vae_forward.1} parent=1 // pred_check
      _
    $region39: #{vae_forward.1} parent=1 // pred_check_branch
      %41 = sbr.rel (0) target = $region41
    $region40: #{vae_forward.1} parent=1 // pred_region
      _
    $region41: #{vae_forward.1} parent=1 // pred_fallthru
      _
    // Predicated region
    $region42: #{vae_forward.1} parent=1 // pred_check
      _
    $region43: #{vae_forward.1} parent=1 // pred_check_branch
      %43 = sbr.rel (0) target = $region45
    $region44: #{vae_forward.1} parent=1 // pred_region
      _
    $region45: #{vae_forward.1} parent=1 // pred_fallthru
      _
    // Predicated region
    $region46: #{vae_forward.1} parent=1 // pred_check
      _
    $region47: #{vae_forward.1} parent=1 // pred_check_branch
      %45 = sbr.rel (0) target = $region49
    $region48: #{vae_forward.1} parent=1 // pred_region
      _
    $region49: #{vae_forward.1} parent=1 // pred_fallthru
      _
    // Predicated region
    $region50: #{vae_forward.1} parent=1 // pred_check
      _
    $region51: #{vae_forward.1} parent=1 // pred_check_branch
      %47 = sbr.rel (0) target = $region53
    $region52: #{vae_forward.1} parent=1 // pred_region
      _
    $region53: #{vae_forward.1} parent=1 // pred_fallthru
      _
    // Predicated region
    $region54: #{vae_forward.1} parent=1 // pred_check
      _
    $region55: #{vae_forward.1} parent=1 // pred_check_branch
      %49 = sbr.rel (0) target = $region57
    $region56: #{vae_forward.1} parent=1 // pred_region
      _
    $region57: #{vae_forward.1} parent=1 // pred_fallthru
      _
    %v51 = vld [vmem:[%s3] sm:$0x1]
    %v52 = vld [vmem:[%s5] sm:$0x1]
    %v53 = vld [vmem:[%s7] sm:$0x3]
    %v54 = vld [vmem:[%s9] sm:$0x1]
    %v55 = vld [vmem:[%s11] sm:$0x1]
    %v56 = vld [vmem:[%s13] sm:$0x3]
    %v57 = vld [vmem:[%s0] sm:$0xff]
    %v58 = vld [vmem:[%s0 + $0x8] sm:$0xff]
    %v59 = vpack.c.bf16 %v57, %v57
    %v60 = vpack.c.bf16 %v58, %v58
    %v61 = vld [vmem:[%s2] sm:$0xf]
    %v62 = vld [vmem:[%s2 + $0x4] sm:$0xf]
    %v63 = vld [vmem:[%s2 + $0x8] sm:$0xf]
    %v64 = vld [vmem:[%s2 + $0xc] sm:$0xf]
    %v65 = vld [vmem:[%s2 + $0x10] sm:$0xf]
    %v66 = vld [vmem:[%s2 + $0x14] sm:$0xf]
    %v67 = vld [vmem:[%s2 + $0x18] sm:$0xf]
    %v68 = vld [vmem:[%s2 + $0x1c] sm:$0xf]
    %v69 = vld [vmem:[%s2 + $0x20] sm:$0xf]
    %v70 = vld [vmem:[%s2 + $0x24] sm:$0xf]
    %v71 = vld [vmem:[%s2 + $0x28] sm:$0xf]
    %v72 = vld [vmem:[%s2 + $0x2c] sm:$0xf]
    %v73 = vld [vmem:[%s2 + $0x30] sm:$0xf]
    %v74 = vld [vmem:[%s2 + $0x34] sm:$0xf]
    %v75 = vld [vmem:[%s2 + $0x38] sm:$0xf]
    %v76 = vld [vmem:[%s2 + $0x3c] sm:$0xf]
    %v77 = vld [vmem:[%s2 + $0x40] sm:$0xf]
    %v78 = vld [vmem:[%s2 + $0x44] sm:$0xf]
    %v79 = vld [vmem:[%s2 + $0x48] sm:$0xf]
    %v80 = vld [vmem:[%s2 + $0x4c] sm:$0xf]
    %v81 = vld [vmem:[%s2 + $0x50] sm:$0xf]
    %v82 = vld [vmem:[%s2 + $0x54] sm:$0xf]
    %v83 = vld [vmem:[%s2 + $0x58] sm:$0xf]
    %v84 = vld [vmem:[%s2 + $0x5c] sm:$0xf]
    %v85 = vld [vmem:[%s2 + $0x60] sm:$0xf]
    %v86 = vld [vmem:[%s2 + $0x64] sm:$0xf]
    %v87 = vld [vmem:[%s2 + $0x68] sm:$0xf]
    %v88 = vld [vmem:[%s2 + $0x6c] sm:$0xf]
    %v89 = vld [vmem:[%s2 + $0x70] sm:$0xf]
    %v90 = vld [vmem:[%s2 + $0x74] sm:$0xf]
    %v91 = vld [vmem:[%s2 + $0x78] sm:$0xf]
    %v92 = vld [vmem:[%s2 + $0x7c] sm:$0xf]
    %v94 = vlaneseq
    %v95 = vshrl.u32 %v94, 7
    %v96 = vsub.s32 0, %v95
    %v97 = vrot.slane %v51, %v96
    %v131 = vunpack.c.l.b16 %v61
    %v132 = vunpack.c.l.b16 %v62
    %v133 = vunpack.c.l.b16 %v63
    %v134 = vunpack.c.l.b16 %v64
    %v135 = vunpack.c.l.b16 %v65
    %v136 = vunpack.c.l.b16 %v66
    %v137 = vunpack.c.l.b16 %v67
    %v138 = vunpack.c.l.b16 %v68
    %v139 = vunpack.c.l.b16 %v69
    %v140 = vunpack.c.l.b16 %v70
    %v141 = vunpack.c.l.b16 %v71
    %v142 = vunpack.c.l.b16 %v72
    %v143 = vunpack.c.l.b16 %v73
    %v144 = vunpack.c.l.b16 %v74
    %v145 = vunpack.c.l.b16 %v75
    %v146 = vunpack.c.l.b16 %v76
    %v147 = vunpack.c.l.b16 %v77
    %v148 = vunpack.c.l.b16 %v78
    %v149 = vunpack.c.l.b16 %v79
    %v150 = vunpack.c.l.b16 %v80
    %v151 = vunpack.c.l.b16 %v81
    %v152 = vunpack.c.l.b16 %v82
    %v153 = vunpack.c.l.b16 %v83
    %v154 = vunpack.c.l.b16 %v84
    %v155 = vunpack.c.l.b16 %v85
    %v156 = vunpack.c.l.b16 %v86
    %v157 = vunpack.c.l.b16 %v87
    %v158 = vunpack.c.l.b16 %v88
    %v159 = vunpack.c.l.b16 %v89
    %v160 = vunpack.c.l.b16 %v90
    %v161 = vunpack.c.l.b16 %v91
    %v162 = vunpack.c.l.b16 %v92
    %v163 = vpack.c.b16 %v132, %v131
    %v164 = vpack.c.b16 %v134, %v133
    %v165 = vpack.c.b16 %v136, %v135
    %v166 = vpack.c.b16 %v138, %v137
    %v167 = vpack.c.b16 %v140, %v139
    %v168 = vpack.c.b16 %v142, %v141
    %v169 = vpack.c.b16 %v144, %v143
    %v170 = vpack.c.b16 %v146, %v145
    %v171 = vpack.c.b16 %v148, %v147
    %v172 = vpack.c.b16 %v150, %v149
    %v173 = vpack.c.b16 %v152, %v151
    %v174 = vpack.c.b16 %v154, %v153
    %v175 = vpack.c.b16 %v156, %v155
    %v176 = vpack.c.b16 %v158, %v157
    %v177 = vpack.c.b16 %v160, %v159
    %v178 = vpack.c.b16 %v162, %v161
    %195 = vmatprep.subr.bf16.mxu0 0
    %196 = vmatpush1.bf16.msra.mxu0 %v163
    %197 = vmatprep.subr.bf16.mxu0 0
    %198 = vmatpush1.bf16.msra.mxu0 %v164
    %199 = vmatprep.subr.bf16.mxu0 0
    %200 = vmatpush1.bf16.msra.mxu0 %v165
    %201 = vmatprep.subr.bf16.mxu0 0
    %202 = vmatpush1.bf16.msra.mxu0 %v166
    %203 = vmatprep.subr.bf16.mxu0 0
    %204 = vmatpush1.bf16.msra.mxu0 %v167
    %205 = vmatprep.subr.bf16.mxu0 0
    %206 = vmatpush1.bf16.msra.mxu0 %v168
    %207 = vmatprep.subr.bf16.mxu0 0
    %208 = vmatpush1.bf16.msra.mxu0 %v169
    %209 = vmatprep.subr.bf16.mxu0 0
    %210 = vmatpush1.bf16.msra.mxu0 %v170
    %211 = vmatprep.subr.bf16.mxu0 0
    %212 = vmatpush1.bf16.msra.mxu0 %v171
    %213 = vmatprep.subr.bf16.mxu0 0
    %214 = vmatpush1.bf16.msra.mxu0 %v172
    %215 = vmatprep.subr.bf16.mxu0 0
    %216 = vmatpush1.bf16.msra.mxu0 %v173
    %217 = vmatprep.subr.bf16.mxu0 0
    %218 = vmatpush1.bf16.msra.mxu0 %v174
    %219 = vmatprep.subr.bf16.mxu0 0
    %220 = vmatpush1.bf16.msra.mxu0 %v175
    %221 = vmatprep.subr.bf16.mxu0 0
    %222 = vmatpush1.bf16.msra.mxu0 %v176
    %223 = vmatprep.subr.bf16.mxu0 0
    %224 = vmatpush1.bf16.msra.mxu0 %v177
    %225 = vmatprep.subr.bf16.mxu0 0
    %226 = vmatpush1.bf16.msra.mxu0 %v178
    %227 = vmatprep.mubr.bf16.mxu0 %v60
    %228 = vmatmul.mubr.bf16.gmra.mrb[0].mxu0 %v59
    %v229 = vpop.f32.mrb[0].mxu0
    %v230 = vadd.f32 %v97, %v229
    %v231 = vpop.f32.mrb[0].mxu0
    %v232 = vpop.f32.mrb[0].mxu0
    %v233 = vpop.f32.mrb[0].mxu0
    %234 = vdwg.mxu0
    %v235 = vmax.f32 %v230, 0.0
    %v236 = vpack.c.bf16 %v235, %v235
    %v237 = vld [vmem:[%s4] sm:$0xf]
    %v238 = vld [vmem:[%s4 + $0x4] sm:$0xf]
    %v239 = vld [vmem:[%s4 + $0x8] sm:$0xf]
    %v240 = vld [vmem:[%s4 + $0xc] sm:$0xf]
    %v241 = vld [vmem:[%s4 + $0x10] sm:$0xf]
    %v242 = vld [vmem:[%s4 + $0x14] sm:$0xf]
    %v243 = vld [vmem:[%s4 + $0x18] sm:$0xf]
    %v244 = vld [vmem:[%s4 + $0x1c] sm:$0xf]
    %v245 = vld [vmem:[%s4 + $0x20] sm:$0xf]
    %v246 = vld [vmem:[%s4 + $0x24] sm:$0xf]
    %v247 = vld [vmem:[%s4 + $0x28] sm:$0xf]
    %v248 = vld [vmem:[%s4 + $0x2c] sm:$0xf]
    %v249 = vld [vmem:[%s4 + $0x30] sm:$0xf]
    %v250 = vld [vmem:[%s4 + $0x34] sm:$0xf]
    %v251 = vld [vmem:[%s4 + $0x38] sm:$0xf]
    %v252 = vld [vmem:[%s4 + $0x3c] sm:$0xf]
    %v254 = vlaneseq
    %v255 = vshrl.u32 %v254, 7
    %v256 = vsub.s32 0, %v255
    %v257 = vrot.slane %v52, %v256
    %v275 = vunpack.c.l.b16 %v237
    %v276 = vunpack.c.l.b16 %v238
    %v277 = vunpack.c.l.b16 %v239
    %v278 = vunpack.c.l.b16 %v240
    %v279 = vunpack.c.l.b16 %v241
    %v280 = vunpack.c.l.b16 %v242
    %v281 = vunpack.c.l.b16 %v243
    %v282 = vunpack.c.l.b16 %v244
    %v283 = vunpack.c.l.b16 %v245
    %v284 = vunpack.c.l.b16 %v246
    %v285 = vunpack.c.l.b16 %v247
    %v286 = vunpack.c.l.b16 %v248
    %v287 = vunpack.c.l.b16 %v249
    %v288 = vunpack.c.l.b16 %v250
    %v289 = vunpack.c.l.b16 %v251
    %v290 = vunpack.c.l.b16 %v252
    %v291 = vpack.c.b16 %v276, %v275
    %v292 = vpack.c.b16 %v278, %v277
    %v293 = vpack.c.b16 %v280, %v279
    %v294 = vpack.c.b16 %v282, %v281
    %v295 = vpack.c.b16 %v284, %v283
    %v296 = vpack.c.b16 %v286, %v285
    %v297 = vpack.c.b16 %v288, %v287
    %v298 = vpack.c.b16 %v290, %v289
    %307 = vmatprep.subr.bf16.mxu0 0
    %308 = vmatpush1.bf16.msra.mxu0 %v291
    %309 = vmatprep.subr.bf16.mxu0 0
    %310 = vmatpush1.bf16.msra.mxu0 %v292
    %311 = vmatprep.subr.bf16.mxu0 0
    %312 = vmatpush1.bf16.msra.mxu0 %v293
    %313 = vmatprep.subr.bf16.mxu0 0
    %314 = vmatpush1.bf16.msra.mxu0 %v294
    %315 = vmatprep.subr.bf16.mxu0 0
    %316 = vmatpush1.bf16.msra.mxu0 %v295
    %317 = vmatprep.subr.bf16.mxu0 0
    %318 = vmatpush1.bf16.msra.mxu0 %v296
    %319 = vmatprep.subr.bf16.mxu0 0
    %320 = vmatpush1.bf16.msra.mxu0 %v297
    %321 = vmatprep.subr.bf16.mxu0 0
    %322 = vmatpush1.bf16.msra.mxu0 %v298
    %323 = vmatprep.subr.bf16.mxu0 0
    %324 = vmatpush1.bf16.msra.mxu0 0
    %325 = vmatprep.subr.bf16.mxu0 0
    %326 = vmatpush1.bf16.msra.mxu0 0
    %327 = vmatprep.subr.bf16.mxu0 0
    %328 = vmatpush1.bf16.msra.mxu0 0
    %329 = vmatprep.subr.bf16.mxu0 0
    %330 = vmatpush1.bf16.msra.mxu0 0
    %331 = vmatprep.subr.bf16.mxu0 0
    %332 = vmatpush1.bf16.msra.mxu0 0
    %333 = vmatprep.subr.bf16.mxu0 0
    %334 = vmatpush1.bf16.msra.mxu0 0
    %335 = vmatprep.subr.bf16.mxu0 0
    %336 = vmatpush1.bf16.msra.mxu0 0
    %337 = vmatprep.subr.bf16.mxu0 0
    %338 = vmatpush1.bf16.msra.mxu0 0
    %339 = vmatprep.mubr.bf16.mxu0 0
    %340 = vmatmul.mubr.bf16.gmra.mrb[0].mxu0 %v236
    %v341 = vpop.f32.mrb[0].mxu0
    %v342 = vadd.f32 %v257, %v341
    %v343 = vpop.f32.mrb[0].mxu0
    %v344 = vpop.f32.mrb[0].mxu0
    %v345 = vpop.f32.mrb[0].mxu0
    %346 = vdwg.mxu0
    %v347 = vmax.f32 %v342, 0.0
    %v348 = vpack.c.bf16 %v347, %v347
    %v349 = vld [vmem:[%s6] sm:$0xff]
    %v350 = vld [vmem:[%s6 + $0x8] sm:$0xff]
    %v351 = vld [vmem:[%s6 + $0x10] sm:$0xff]
    %v352 = vld [vmem:[%s6 + $0x18] sm:$0xff]
    %v353 = vld [vmem:[%s6 + $0x20] sm:$0xff]
    %v354 = vld [vmem:[%s6 + $0x28] sm:$0xff]
    %v355 = vld [vmem:[%s6 + $0x30] sm:$0xff]
    %v356 = vld [vmem:[%s6 + $0x38] sm:$0xff]
    %v357 = vld [vmem:[%s6 + $0x40] sm:$0xff]
    %v358 = vld [vmem:[%s6 + $0x48] sm:$0xff]
    %v359 = vld [vmem:[%s6 + $0x50] sm:$0xff]
    %v360 = vld [vmem:[%s6 + $0x58] sm:$0xff]
    %v361 = vld [vmem:[%s6 + $0x60] sm:$0xff]
    %v362 = vld [vmem:[%s6 + $0x68] sm:$0xff]
    %v363 = vld [vmem:[%s6 + $0x70] sm:$0xff]
    %v364 = vld [vmem:[%s6 + $0x78] sm:$0xff]
    %v366 = vlaneseq
    %v367 = vshrl.u32 %v366, 7
    %v368 = vsub.s32 0, %v367
    %v369 = vrot.slane %v53, %v368
    %v370 = vlaneseq
    %v371 = vshrl.u32 %v370, 7
    %v372 = vsub.s32 1, %v371
    %v373 = vrot.slane %v53, %v372
    %v392 = vunpack.c.l.b16 %v349
    %v393 = vunpack.c.h.b16 %v349
    %v394 = vunpack.c.l.b16 %v350
    %v395 = vunpack.c.h.b16 %v350
    %v396 = vunpack.c.l.b16 %v351
    %v397 = vunpack.c.h.b16 %v351
    %v398 = vunpack.c.l.b16 %v352
    %v399 = vunpack.c.h.b16 %v352
    %v400 = vunpack.c.l.b16 %v353
    %v401 = vunpack.c.h.b16 %v353
    %v402 = vunpack.c.l.b16 %v354
    %v403 = vunpack.c.h.b16 %v354
    %v404 = vunpack.c.l.b16 %v355
    %v405 = vunpack.c.h.b16 %v355
    %v406 = vunpack.c.l.b16 %v356
    %v407 = vunpack.c.h.b16 %v356
    %v408 = vunpack.c.l.b16 %v357
    %v409 = vunpack.c.h.b16 %v357
    %v410 = vunpack.c.l.b16 %v358
    %v411 = vunpack.c.h.b16 %v358
    %v412 = vunpack.c.l.b16 %v359
    %v413 = vunpack.c.h.b16 %v359
    %v414 = vunpack.c.l.b16 %v360
    %v415 = vunpack.c.h.b16 %v360
    %v416 = vunpack.c.l.b16 %v361
    %v417 = vunpack.c.h.b16 %v361
    %v418 = vunpack.c.l.b16 %v362
    %v419 = vunpack.c.h.b16 %v362
    %v420 = vunpack.c.l.b16 %v363
    %v421 = vunpack.c.h.b16 %v363
    %v422 = vunpack.c.l.b16 %v364
    %v423 = vunpack.c.h.b16 %v364
    %v424 = vpack.c.b16 %v394, %v392
    %v425 = vpack.c.b16 %v395, %v393
    %v426 = vpack.c.b16 %v398, %v396
    %v427 = vpack.c.b16 %v399, %v397
    %v428 = vpack.c.b16 %v402, %v400
    %v429 = vpack.c.b16 %v403, %v401
    %v430 = vpack.c.b16 %v406, %v404
    %v431 = vpack.c.b16 %v407, %v405
    %v432 = vpack.c.b16 %v410, %v408
    %v433 = vpack.c.b16 %v411, %v409
    %v434 = vpack.c.b16 %v414, %v412
    %v435 = vpack.c.b16 %v415, %v413
    %v436 = vpack.c.b16 %v418, %v416
    %v437 = vpack.c.b16 %v419, %v417
    %v438 = vpack.c.b16 %v422, %v420
    %v439 = vpack.c.b16 %v423, %v421
    %456 = vmatprep.subr.bf16.mxu0 %v425
    %457 = vmatpush1.bf16.msra.mxu0 %v424
    %458 = vmatprep.subr.bf16.mxu0 %v427
    %459 = vmatpush1.bf16.msra.mxu0 %v426
    %460 = vmatprep.subr.bf16.mxu0 %v429
    %461 = vmatpush1.bf16.msra.mxu0 %v428
    %462 = vmatprep.subr.bf16.mxu0 %v431
    %463 = vmatpush1.bf16.msra.mxu0 %v430
    %464 = vmatprep.subr.bf16.mxu0 %v433
    %465 = vmatpush1.bf16.msra.mxu0 %v432
    %466 = vmatprep.subr.bf16.mxu0 %v435
    %467 = vmatpush1.bf16.msra.mxu0 %v434
    %468 = vmatprep.subr.bf16.mxu0 %v437
    %469 = vmatpush1.bf16.msra.mxu0 %v436
    %470 = vmatprep.subr.bf16.mxu0 %v439
    %471 = vmatpush1.bf16.msra.mxu0 %v438
    %472 = vmatprep.subr.bf16.mxu0 0
    %473 = vmatpush1.bf16.msra.mxu0 0
    %474 = vmatprep.subr.bf16.mxu0 0
    %475 = vmatpush1.bf16.msra.mxu0 0
    %476 = vmatprep.subr.bf16.mxu0 0
    %477 = vmatpush1.bf16.msra.mxu0 0
    %478 = vmatprep.subr.bf16.mxu0 0
    %479 = vmatpush1.bf16.msra.mxu0 0
    %480 = vmatprep.subr.bf16.mxu0 0
    %481 = vmatpush1.bf16.msra.mxu0 0
    %482 = vmatprep.subr.bf16.mxu0 0
    %483 = vmatpush1.bf16.msra.mxu0 0
    %484 = vmatprep.subr.bf16.mxu0 0
    %485 = vmatpush1.bf16.msra.mxu0 0
    %486 = vmatprep.subr.bf16.mxu0 0
    %487 = vmatpush1.bf16.msra.mxu0 0
    %488 = vmatprep.mubr.bf16.mxu0 0
    %489 = vmatmul.mubr.bf16.gmra.mrb[0].mxu0 %v348
    %v490 = vpop.f32.mrb[0].mxu0
    %v491 = vadd.f32 %v369, %v490
    %v492 = vpop.f32.mrb[0].mxu0
    %v493 = vadd.f32 %v373, %v492
    %v494 = vpop.f32.mrb[0].mxu0
    %v495 = vpop.f32.mrb[0].mxu0
    %496 = vdwg.mxu0
    %v497 = vmul.f32 %v493, 0.5
    %v498 = vmul.f32 %v497, 1.442695
    %v499 = vpow.pop %v498
    %v500 = vld [vmem:[%s1] sm:$0xff]
    %v501 = vmul.f32 %v500, %v499
    %v502 = vadd.f32 %v501, %v491
    %v503 = vpack.c.bf16 %v502, %v502
    %v504 = vld [vmem:[%s8] sm:$0xf]
    %v505 = vld [vmem:[%s8 + $0x4] sm:$0xf]
    %v506 = vld [vmem:[%s8 + $0x8] sm:$0xf]
    %v507 = vld [vmem:[%s8 + $0xc] sm:$0xf]
    %v508 = vld [vmem:[%s8 + $0x10] sm:$0xf]
    %v509 = vld [vmem:[%s8 + $0x14] sm:$0xf]
    %v510 = vld [vmem:[%s8 + $0x18] sm:$0xf]
    %v511 = vld [vmem:[%s8 + $0x1c] sm:$0xf]
    %v512 = vld [vmem:[%s8 + $0x20] sm:$0xf]
    %v513 = vld [vmem:[%s8 + $0x24] sm:$0xf]
    %v514 = vld [vmem:[%s8 + $0x28] sm:$0xf]
    %v515 = vld [vmem:[%s8 + $0x2c] sm:$0xf]
    %v516 = vld [vmem:[%s8 + $0x30] sm:$0xf]
    %v517 = vld [vmem:[%s8 + $0x34] sm:$0xf]
    %v518 = vld [vmem:[%s8 + $0x38] sm:$0xf]
    %v519 = vld [vmem:[%s8 + $0x3c] sm:$0xf]
    %v521 = vlaneseq
    %v522 = vshrl.u32 %v521, 7
    %v523 = vsub.s32 0, %v522
    %v524 = vrot.slane %v54, %v523
    %v542 = vunpack.c.l.b16 %v504
    %v543 = vunpack.c.l.b16 %v505
    %v544 = vunpack.c.l.b16 %v506
    %v545 = vunpack.c.l.b16 %v507
    %v546 = vunpack.c.l.b16 %v508
    %v547 = vunpack.c.l.b16 %v509
    %v548 = vunpack.c.l.b16 %v510
    %v549 = vunpack.c.l.b16 %v511
    %v550 = vunpack.c.l.b16 %v512
    %v551 = vunpack.c.l.b16 %v513
    %v552 = vunpack.c.l.b16 %v514
    %v553 = vunpack.c.l.b16 %v515
    %v554 = vunpack.c.l.b16 %v516
    %v555 = vunpack.c.l.b16 %v517
    %v556 = vunpack.c.l.b16 %v518
    %v557 = vunpack.c.l.b16 %v519
    %v558 = vpack.c.b16 %v543, %v542
    %v559 = vpack.c.b16 %v545, %v544
    %v560 = vpack.c.b16 %v547, %v546
    %v561 = vpack.c.b16 %v549, %v548
    %v562 = vpack.c.b16 %v551, %v550
    %v563 = vpack.c.b16 %v553, %v552
    %v564 = vpack.c.b16 %v555, %v554
    %v565 = vpack.c.b16 %v557, %v556
    %574 = vmatprep.subr.bf16.mxu0 0
    %575 = vmatpush1.bf16.msra.mxu0 %v558
    %576 = vmatprep.subr.bf16.mxu0 0
    %577 = vmatpush1.bf16.msra.mxu0 %v559
    %578 = vmatprep.subr.bf16.mxu0 0
    %579 = vmatpush1.bf16.msra.mxu0 %v560
    %580 = vmatprep.subr.bf16.mxu0 0
    %581 = vmatpush1.bf16.msra.mxu0 %v561
    %582 = vmatprep.subr.bf16.mxu0 0
    %583 = vmatpush1.bf16.msra.mxu0 %v562
    %584 = vmatprep.subr.bf16.mxu0 0
    %585 = vmatpush1.bf16.msra.mxu0 %v563
    %586 = vmatprep.subr.bf16.mxu0 0
    %587 = vmatpush1.bf16.msra.mxu0 %v564
    %588 = vmatprep.subr.bf16.mxu0 0
    %589 = vmatpush1.bf16.msra.mxu0 %v565
    %590 = vmatprep.subr.bf16.mxu0 0
    %591 = vmatpush1.bf16.msra.mxu0 0
    %592 = vmatprep.subr.bf16.mxu0 0
    %593 = vmatpush1.bf16.msra.mxu0 0
    %594 = vmatprep.subr.bf16.mxu0 0
    %595 = vmatpush1.bf16.msra.mxu0 0
    %596 = vmatprep.subr.bf16.mxu0 0
    %597 = vmatpush1.bf16.msra.mxu0 0
    %598 = vmatprep.subr.bf16.mxu0 0
    %599 = vmatpush1.bf16.msra.mxu0 0
    %600 = vmatprep.subr.bf16.mxu0 0
    %601 = vmatpush1.bf16.msra.mxu0 0
    %602 = vmatprep.subr.bf16.mxu0 0
    %603 = vmatpush1.bf16.msra.mxu0 0
    %604 = vmatprep.subr.bf16.mxu0 0
    %605 = vmatpush1.bf16.msra.mxu0 0
    %606 = vmatprep.mubr.bf16.mxu0 0
    %607 = vmatmul.mubr.bf16.gmra.mrb[0].mxu0 %v503
    %v608 = vpop.f32.mrb[0].mxu0
    %v609 = vadd.f32 %v524, %v608
    %v610 = vpop.f32.mrb[0].mxu0
    %v611 = vpop.f32.mrb[0].mxu0
    %v612 = vpop.f32.mrb[0].mxu0
    %613 = vdwg.mxu0
    %v614 = vmax.f32 %v609, 0.0
    %v615 = vpack.c.bf16 %v614, %v614
    %v616 = vld [vmem:[%s10] sm:$0xf]
    %v617 = vld [vmem:[%s10 + $0x4] sm:$0xf]
    %v618 = vld [vmem:[%s10 + $0x8] sm:$0xf]
    %v619 = vld [vmem:[%s10 + $0xc] sm:$0xf]
    %v620 = vld [vmem:[%s10 + $0x10] sm:$0xf]
    %v621 = vld [vmem:[%s10 + $0x14] sm:$0xf]
    %v622 = vld [vmem:[%s10 + $0x18] sm:$0xf]
    %v623 = vld [vmem:[%s10 + $0x1c] sm:$0xf]
    %v624 = vld [vmem:[%s10 + $0x20] sm:$0xf]
    %v625 = vld [vmem:[%s10 + $0x24] sm:$0xf]
    %v626 = vld [vmem:[%s10 + $0x28] sm:$0xf]
    %v627 = vld [vmem:[%s10 + $0x2c] sm:$0xf]
    %v628 = vld [vmem:[%s10 + $0x30] sm:$0xf]
    %v629 = vld [vmem:[%s10 + $0x34] sm:$0xf]
    %v630 = vld [vmem:[%s10 + $0x38] sm:$0xf]
    %v631 = vld [vmem:[%s10 + $0x3c] sm:$0xf]
    %v633 = vlaneseq
    %v634 = vshrl.u32 %v633, 7
    %v635 = vsub.s32 0, %v634
    %v636 = vrot.slane %v55, %v635
    %v654 = vunpack.c.l.b16 %v616
    %v655 = vunpack.c.l.b16 %v617
    %v656 = vunpack.c.l.b16 %v618
    %v657 = vunpack.c.l.b16 %v619
    %v658 = vunpack.c.l.b16 %v620
    %v659 = vunpack.c.l.b16 %v621
    %v660 = vunpack.c.l.b16 %v622
    %v661 = vunpack.c.l.b16 %v623
    %v662 = vunpack.c.l.b16 %v624
    %v663 = vunpack.c.l.b16 %v625
    %v664 = vunpack.c.l.b16 %v626
    %v665 = vunpack.c.l.b16 %v627
    %v666 = vunpack.c.l.b16 %v628
    %v667 = vunpack.c.l.b16 %v629
    %v668 = vunpack.c.l.b16 %v630
    %v669 = vunpack.c.l.b16 %v631
    %v670 = vpack.c.b16 %v655, %v654
    %v671 = vpack.c.b16 %v657, %v656
    %v672 = vpack.c.b16 %v659, %v658
    %v673 = vpack.c.b16 %v661, %v660
    %v674 = vpack.c.b16 %v663, %v662
    %v675 = vpack.c.b16 %v665, %v664
    %v676 = vpack.c.b16 %v667, %v666
    %v677 = vpack.c.b16 %v669, %v668
    %686 = vmatprep.subr.bf16.mxu0 0
    %687 = vmatpush1.bf16.msra.mxu0 %v670
    %688 = vmatprep.subr.bf16.mxu0 0
    %689 = vmatpush1.bf16.msra.mxu0 %v671
    %690 = vmatprep.subr.bf16.mxu0 0
    %691 = vmatpush1.bf16.msra.mxu0 %v672
    %692 = vmatprep.subr.bf16.mxu0 0
    %693 = vmatpush1.bf16.msra.mxu0 %v673
    %694 = vmatprep.subr.bf16.mxu0 0
    %695 = vmatpush1.bf16.msra.mxu0 %v674
    %696 = vmatprep.subr.bf16.mxu0 0
    %697 = vmatpush1.bf16.msra.mxu0 %v675
    %698 = vmatprep.subr.bf16.mxu0 0
    %699 = vmatpush1.bf16.msra.mxu0 %v676
    %700 = vmatprep.subr.bf16.mxu0 0
    %701 = vmatpush1.bf16.msra.mxu0 %v677
    %702 = vmatprep.subr.bf16.mxu0 0
    %703 = vmatpush1.bf16.msra.mxu0 0
    %704 = vmatprep.subr.bf16.mxu0 0
    %705 = vmatpush1.bf16.msra.mxu0 0
    %706 = vmatprep.subr.bf16.mxu0 0
    %707 = vmatpush1.bf16.msra.mxu0 0
    %708 = vmatprep.subr.bf16.mxu0 0
    %709 = vmatpush1.bf16.msra.mxu0 0
    %710 = vmatprep.subr.bf16.mxu0 0
    %711 = vmatpush1.bf16.msra.mxu0 0
    %712 = vmatprep.subr.bf16.mxu0 0
    %713 = vmatpush1.bf16.msra.mxu0 0
    %714 = vmatprep.subr.bf16.mxu0 0
    %715 = vmatpush1.bf16.msra.mxu0 0
    %716 = vmatprep.subr.bf16.mxu0 0
    %717 = vmatpush1.bf16.msra.mxu0 0
    %718 = vmatprep.mubr.bf16.mxu0 0
    %719 = vmatmul.mubr.bf16.gmra.mrb[0].mxu0 %v615
    %v720 = vpop.f32.mrb[0].mxu0
    %v721 = vadd.f32 %v636, %v720
    %v722 = vpop.f32.mrb[0].mxu0
    %v723 = vpop.f32.mrb[0].mxu0
    %v724 = vpop.f32.mrb[0].mxu0
    %725 = vdwg.mxu0
    %v726 = vmax.f32 %v721, 0.0
    %v727 = vpack.c.bf16 %v726, %v726
    %v728 = vld [vmem:[%s12] sm:$0xff]
    %v729 = vld [vmem:[%s12 + $0x8] sm:$0xff]
    %v730 = vld [vmem:[%s12 + $0x10] sm:$0xff]
    %v731 = vld [vmem:[%s12 + $0x18] sm:$0xff]
    %v732 = vld [vmem:[%s12 + $0x20] sm:$0xff]
    %v733 = vld [vmem:[%s12 + $0x28] sm:$0xff]
    %v734 = vld [vmem:[%s12 + $0x30] sm:$0xff]
    %v735 = vld [vmem:[%s12 + $0x38] sm:$0xff]
    %v736 = vld [vmem:[%s12 + $0x40] sm:$0xff]
    %v737 = vld [vmem:[%s12 + $0x48] sm:$0xff]
    %v738 = vld [vmem:[%s12 + $0x50] sm:$0xff]
    %v739 = vld [vmem:[%s12 + $0x58] sm:$0xff]
    %v740 = vld [vmem:[%s12 + $0x60] sm:$0xff]
    %v741 = vld [vmem:[%s12 + $0x68] sm:$0xff]
    %v742 = vld [vmem:[%s12 + $0x70] sm:$0xff]
    %v743 = vld [vmem:[%s12 + $0x78] sm:$0xff]
    %v745 = vlaneseq
    %v746 = vshrl.u32 %v745, 7
    %v747 = vsub.s32 0, %v746
    %v748 = vrot.slane %v56, %v747
    %v749 = vlaneseq
    %v750 = vshrl.u32 %v749, 7
    %v751 = vsub.s32 1, %v750
    %v752 = vrot.slane %v56, %v751
    %v771 = vunpack.c.l.b16 %v728
    %v772 = vunpack.c.h.b16 %v728
    %v773 = vunpack.c.l.b16 %v729
    %v774 = vunpack.c.h.b16 %v729
    %v775 = vunpack.c.l.b16 %v730
    %v776 = vunpack.c.h.b16 %v730
    %v777 = vunpack.c.l.b16 %v731
    %v778 = vunpack.c.h.b16 %v731
    %v779 = vunpack.c.l.b16 %v732
    %v780 = vunpack.c.h.b16 %v732
    %v781 = vunpack.c.l.b16 %v733
    %v782 = vunpack.c.h.b16 %v733
    %v783 = vunpack.c.l.b16 %v734
    %v784 = vunpack.c.h.b16 %v734
    %v785 = vunpack.c.l.b16 %v735
    %v786 = vunpack.c.h.b16 %v735
    %v787 = vunpack.c.l.b16 %v736
    %v788 = vunpack.c.h.b16 %v736
    %v789 = vunpack.c.l.b16 %v737
    %v790 = vunpack.c.h.b16 %v737
    %v791 = vunpack.c.l.b16 %v738
    %v792 = vunpack.c.h.b16 %v738
    %v793 = vunpack.c.l.b16 %v739
    %v794 = vunpack.c.h.b16 %v739
    %v795 = vunpack.c.l.b16 %v740
    %v796 = vunpack.c.h.b16 %v740
    %v797 = vunpack.c.l.b16 %v741
    %v798 = vunpack.c.h.b16 %v741
    %v799 = vunpack.c.l.b16 %v742
    %v800 = vunpack.c.h.b16 %v742
    %v801 = vunpack.c.l.b16 %v743
    %v802 = vunpack.c.h.b16 %v743
    %v803 = vpack.c.b16 %v773, %v771
    %v804 = vpack.c.b16 %v774, %v772
    %v805 = vpack.c.b16 %v777, %v775
    %v806 = vpack.c.b16 %v778, %v776
    %v807 = vpack.c.b16 %v781, %v779
    %v808 = vpack.c.b16 %v782, %v780
    %v809 = vpack.c.b16 %v785, %v783
    %v810 = vpack.c.b16 %v786, %v784
    %v811 = vpack.c.b16 %v789, %v787
    %v812 = vpack.c.b16 %v790, %v788
    %v813 = vpack.c.b16 %v793, %v791
    %v814 = vpack.c.b16 %v794, %v792
    %v815 = vpack.c.b16 %v797, %v795
    %v816 = vpack.c.b16 %v798, %v796
    %v817 = vpack.c.b16 %v801, %v799
    %v818 = vpack.c.b16 %v802, %v800
    %835 = vmatprep.subr.bf16.mxu0 %v804
    %836 = vmatpush1.bf16.msra.mxu0 %v803
    %837 = vmatprep.subr.bf16.mxu0 %v806
    %838 = vmatpush1.bf16.msra.mxu0 %v805
    %839 = vmatprep.subr.bf16.mxu0 %v808
    %840 = vmatpush1.bf16.msra.mxu0 %v807
    %841 = vmatprep.subr.bf16.mxu0 %v810
    %842 = vmatpush1.bf16.msra.mxu0 %v809
    %843 = vmatprep.subr.bf16.mxu0 %v812
    %844 = vmatpush1.bf16.msra.mxu0 %v811
    %845 = vmatprep.subr.bf16.mxu0 %v814
    %846 = vmatpush1.bf16.msra.mxu0 %v813
    %847 = vmatprep.subr.bf16.mxu0 %v816
    %848 = vmatpush1.bf16.msra.mxu0 %v815
    %849 = vmatprep.subr.bf16.mxu0 %v818
    %850 = vmatpush1.bf16.msra.mxu0 %v817
    %851 = vmatprep.subr.bf16.mxu0 0
    %852 = vmatpush1.bf16.msra.mxu0 0
    %853 = vmatprep.subr.bf16.mxu0 0
    %854 = vmatpush1.bf16.msra.mxu0 0
    %855 = vmatprep.subr.bf16.mxu0 0
    %856 = vmatpush1.bf16.msra.mxu0 0
    %857 = vmatprep.subr.bf16.mxu0 0
    %858 = vmatpush1.bf16.msra.mxu0 0
    %859 = vmatprep.subr.bf16.mxu0 0
    %860 = vmatpush1.bf16.msra.mxu0 0
    %861 = vmatprep.subr.bf16.mxu0 0
    %862 = vmatpush1.bf16.msra.mxu0 0
    %863 = vmatprep.subr.bf16.mxu0 0
    %864 = vmatpush1.bf16.msra.mxu0 0
    %865 = vmatprep.subr.bf16.mxu0 0
    %866 = vmatpush1.bf16.msra.mxu0 0
    %867 = vmatprep.mubr.bf16.mxu0 0
    %868 = vmatmul.mubr.bf16.gmra.mrb[0].mxu0 %v727
    %v869 = vpop.f32.mrb[0].mxu0
    %v870 = vadd.f32 %v748, %v869
    %v871 = vpop.f32.mrb[0].mxu0
    %v872 = vadd.f32 %v752, %v871
    %v873 = vpop.f32.mrb[0].mxu0
    %v874 = vpop.f32.mrb[0].mxu0
    %875 = vdwg.mxu0
    %v876 = vxor.u32 %v870, 2147483648
    %v877 = vxor.u32 %v872, 2147483648
    %v878 = vmul.f32 %v876, 1.442695
    %v879 = vpow.pop %v878
    %v880 = vmul.f32 %v877, 1.442695
    %v881 = vpow.pop %v880
    %v882 = vadd.f32 %v879, 1.0
    %v883 = vadd.f32 %v881, 1.0
    %v884 = vrcp.pop %v882
    %v885 = vmul.f32 1.0, %v884
    %v886 = vrcp.pop %v883
    %v887 = vmul.f32 1.0, %v886
    %888 = vst [vmem:[#allocation2] sm:$0xff] %v885
    %889 = vst [vmem:[#allocation2 + $0x8] sm:$0xff] %v887
    %890 = vst [vmem:[%s15] sm:$0xff] %v491
    %891 = vst [vmem:[%s15 + $0x8] sm:$0xff] %v493
    // Predicated region
    $region58: #{vae_forward.1} parent=1 // pred_check
      _
    $region59: #{vae_forward.1} parent=1 // pred_check_branch
      %893 = sbr.rel (0) target = $region61
    $region60: #{vae_forward.1} parent=1 // pred_region
      %s895 = ssub.s32 256, 256
      %896 = vsyncadd [#allocation3], %s895
      %s898 = sshll.u32 [#allocation2], 4
      %s899 = int_to_ptr.vmem [resolvable:$true] %s898
      %901 = dma.vmem_to_hbm [thread:$0]  %s899, 256, %s14, [#allocation3]
    $region61: #{vae_forward.1} parent=1 // pred_fallthru
      _
    // Predicated region
    $region62: #{vae_forward.1} parent=1 // pred_check
      _
    $region63: #{vae_forward.1} parent=1 // pred_check_branch
      %903 = sbr.rel (0) target = $region65
    $region64: #{vae_forward.1} parent=1 // pred_region
      _
    $region65: #{vae_forward.1} parent=1 // pred_fallthru
      _
    // Predicated region
    $region66: #{vae_forward.1} parent=1 // pred_check
      _
    $region67: #{vae_forward.1} parent=1 // pred_check_branch
      %905 = sbr.rel (0) target = $region69
    $region68: #{vae_forward.1} parent=1 // pred_region
      %906 = dma.done [#allocation3], 256
    $region69: #{vae_forward.1} parent=1 // pred_fallthru
      _
    // Predicated region
    $region70: #{vae_forward.1} parent=1 // pred_check
      _
    $region71: #{vae_forward.1} parent=1 // pred_check_branch
      %908 = sbr.rel (0) target = $region73
    $region72: #{vae_forward.1} parent=1 // pred_region
      _
    $region73: #{vae_forward.1} parent=1 // pred_fallthru
      _
    %909 = vsyncpa [#allocation3], 1

</llo_original>
